<compile_context>
chip_gen: v7x
topology: tpu7x:2x2x1
jax: 0.10.0
libtpu: 0.0.40
codegen_flags: <defaults>
</compile_context>

<pallas_src>
import functools

import jax
import jax.numpy as jnp
from jax.experimental import pallas as pl
from jax.experimental.pallas import tpu as pltpu


def _round_up(x, m):
    return ((x + m - 1) // m) * m


def _sublane_multiple(dtype):
    # Packed sublane multiple: 8 for 4-byte, 16 for 2-byte, 32 for 1-byte.
    itemsize = jnp.dtype(dtype).itemsize
    return max(8, 32 // itemsize)


def _mean_rows_single_k_kernel(x_ref, o_ref, *, inv_count):
    # x_ref: (TM, COLS) — entire reduction extent in one block.
    x = x_ref[...].astype(jnp.float32)
    o_ref[...] = (jnp.sum(x, axis=1, keepdims=True) * inv_count).astype(o_ref.dtype)


def _mean_rows_multi_k_kernel(x_ref, o_ref, acc_ref, *, total_cols, tk,
                              inv_count, mask_cols):
    # x_ref : (TM, TK) tile of the (N*C, H*W) matrix
    # o_ref : (TM, 1)  output block (same block across k -> resident)
    # acc_ref: (TM, 1) f32 VMEM scratch accumulator
    k = pl.program_id(1)
    last = pl.num_programs(1) - 1

    @pl.when(k == 0)
    def _():
        acc_ref[...] = jnp.zeros_like(acc_ref)

    if mask_cols:
        # Mask only the single partial last tile; all other steps are a pure
        # load + accumulate (no per-vreg iota/compare/select cost).
        @pl.when(k != last)
        def _():
            x = x_ref[...].astype(jnp.float32)
            acc_ref[...] += jnp.sum(x, axis=1, keepdims=True)

        @pl.when(k == last)
        def _():
            x = x_ref[...].astype(jnp.float32)
            rem = total_cols - k * tk  # scalar: valid columns in this tile
            col = jax.lax.broadcasted_iota(jnp.int32, x.shape, 1)
            x = jnp.where(col < rem, x, 0.0)
            acc_ref[...] += jnp.sum(x, axis=1, keepdims=True)
    else:
        x = x_ref[...].astype(jnp.float32)
        acc_ref[...] += jnp.sum(x, axis=1, keepdims=True)

    @pl.when(k == last)
    def _():
        o_ref[...] = (acc_ref[...] * inv_count).astype(o_ref.dtype)


def averaging_module(x_nchw, *, tm=None, tk=None):
    """Equivalent of torch.mean(x, (2, 3)) for NCHW input -> (N, C)."""
    n, c, h, w = x_nchw.shape
    rows = n * c
    cols = h * w
    dtype = x_nchw.dtype
    itemsize = jnp.dtype(dtype).itemsize
    sub = _sublane_multiple(dtype)

    # Free reshape of the contiguous NCHW tensor: no transpose, no extra HBM
    # traffic. Each row is one (n, c) pair's H*W spatial elements.
    x2d = x_nchw.reshape(rows, cols)

    # Generation-aware VMEM budgeting (fallback sized for v7x, the smallest).
    try:
        info = pltpu.get_tpu_info()
        vmem_capacity = int(getattr(info, "vmem_capacity_bytes", 0))
    except Exception:
        vmem_capacity = 0
    if vmem_capacity < 16 * 1024 * 1024:
        vmem_capacity = 64 * 1024 * 1024
    vmem_limit = min(vmem_capacity // 2, 64 * 1024 * 1024)
    per_buffer_budget = vmem_limit // 3  # double-buffered input + headroom

    cols_padded = _round_up(cols, 128)
    rows_padded = _round_up(rows, sub)
    inv_count = 1.0 / float(cols)

    min_row_block = tm if tm is not None else sub
    single_k = ((tk is None or tk >= cols)
                and cols_padded * itemsize * min_row_block <= per_buffer_budget)

    if single_k:
        # Whole reduction extent per block: 1-D grid, no scratch, no phases.
        if tm is None:
            tm = per_buffer_budget // (cols_padded * itemsize)
            tm = max(sub, (tm // sub) * sub)
            tm = min(tm, rows_padded, 2048)
            if rows >= 2 * sub:
                # Keep at least 2 row blocks so both v7x TensorCores get work.
                tm = min(tm, _round_up(-(-rows // 2), sub))
        grid = (pl.cdiv(rows, tm),)
        kernel = functools.partial(_mean_rows_single_k_kernel,
                                   inv_count=inv_count)
        out2d = pl.pallas_call(
            kernel,
            out_shape=jax.ShapeDtypeStruct((rows, 1), dtype),
            grid_spec=pltpu.PrefetchScalarGridSpec(
                num_scalar_prefetch=0,
                grid=grid,
                in_specs=[pl.BlockSpec((tm, cols), lambda i: (i, 0))],
                out_specs=pl.BlockSpec((tm, 1), lambda i: (i, 0)),
            ),
            compiler_params=pltpu.CompilerParams(
                dimension_semantics=("parallel",),
                vmem_limit_bytes=vmem_limit,
            ),
        )(x2d)
    else:
        # Large H*W: tiled reduction with resident f32 accumulator.
        if tm is None:
            tm = min(512, rows_padded)
            tm = max(sub, (tm // sub) * sub)
            if rows >= 2 * sub:
                tm = min(tm, _round_up(-(-rows // 2), sub))
        if tk is None:
            tk = per_buffer_budget // (tm * itemsize)
            tk = max(128, (tk // 128) * 128)
            tk = min(tk, cols_padded)
        grid = (pl.cdiv(rows, tm), pl.cdiv(cols, tk))
        mask_cols = (cols % tk) != 0
        kernel = functools.partial(
            _mean_rows_multi_k_kernel,
            total_cols=cols,
            tk=tk,
            inv_count=inv_count,
            mask_cols=mask_cols,
        )
        out2d = pl.pallas_call(
            kernel,
            out_shape=jax.ShapeDtypeStruct((rows, 1), dtype),
            grid_spec=pltpu.PrefetchScalarGridSpec(
                num_scalar_prefetch=0,
                grid=grid,
                in_specs=[pl.BlockSpec((tm, tk), lambda i, k: (i, k))],
                out_specs=pl.BlockSpec((tm, 1), lambda i, k: (i, 0)),
                scratch_shapes=[pltpu.VMEM((tm, 1), jnp.float32)],
            ),
            compiler_params=pltpu.CompilerParams(
                dimension_semantics=("parallel", "arbitrary"),
                vmem_limit_bytes=vmem_limit,
            ),
        )(x2d)

    return out2d.reshape(n, c)


if __name__ == "__main__":
    key = jax.random.PRNGKey(0)

    # Small shapes consistent with an NCHW conv-feature-map input.
    N, C, H, W = 2, 4, 16, 16
    x = jax.random.normal(key, (N, C, H, W), dtype=jnp.float32)

    y = averaging_module(x)
    jax.block_until_ready(y)
    y_ref = jnp.mean(x, axis=(2, 3))
    assert y.shape == (N, C), y.shape
    assert jnp.allclose(y, y_ref, atol=1e-5, rtol=1e-5), (y, y_ref)

    # Also exercise the tiled multi-K path (with a partial, masked last tile)
    # by forcing small tiles on a non-multiple-of-tk spatial size.
    x2 = jax.random.normal(jax.random.PRNGKey(1), (2, 4, 16, 24),
                           dtype=jnp.float32)
    y2 = averaging_module(x2, tm=8, tk=256)
    jax.block_until_ready(y2)
    y2_ref = jnp.mean(x2, axis=(2, 3))
    assert jnp.allclose(y2, y2_ref, atol=1e-5, rtol=1e-5), (y2, y2_ref)

    print("KERNEL_OK")
</pallas_src>

<mosaic_0001>
module attributes {stable_mosaic.version = 11 : i64} {
  func.func @_mean_rows_single_k_kernel(%arg0: i32, %arg1: memref<8x256xf32, #tpu.memory_space<vmem>>, %arg2: memref<8x1xf32, #tpu.memory_space<vmem>>) attributes {dimension_semantics = [#tpu.dimension_semantics<parallel>], iteration_bounds = array<i64: 1>, scalar_prefetch = 0 : i64, scratch_operands = 0 : i64, tpu.core_type = #tpu.core_type<tc>, window_params = [{transform_indices = @transform_0, window_bounds = array<i64: 8, 256>}, {transform_indices = @transform_1, window_bounds = array<i64: 8, 1>}]} {
    %c0 = arith.constant 0 : index
    %c0_0 = arith.constant 0 : index
    %0 = vector.load %arg1[%c0, %c0_0] : memref<8x256xf32, #tpu.memory_space<vmem>>, vector<8x256xf32>
    %cst = arith.constant dense<0.000000e+00> : vector<8xf32>
    %1 = vector.multi_reduction <add>, %0, %cst [1] : vector<8x256xf32> to vector<8xf32>
    %2 = vector.shape_cast %1 : vector<8xf32> to vector<8x1xf32>
    %cst_1 = arith.constant 3.906250e-03 : f32
    %3 = vector.broadcast %cst_1 : f32 to vector<8x1xf32>
    %4 = arith.mulf %2, %3 : vector<8x1xf32>
    %c0_2 = arith.constant 0 : index
    %c0_3 = arith.constant 0 : index
    %5 = vector.load %arg2[%c0_2, %c0_3] : memref<8x1xf32, #tpu.memory_space<vmem>>, vector<8x1xf32>
    tpu.vector_store %arg2[%c0_2, %c0_3], %4 {strides = array<i32>} : memref<8x1xf32, #tpu.memory_space<vmem>>, vector<8x1xf32>,
    return
  }
  func.func @transform_0(%arg0: i32) -> (i32, i32) {
    %c0_i32 = arith.constant 0 : i32
    %c0_i32_0 = arith.constant 0 : i32
    return %arg0, %c0_i32 : i32, i32
  }
  func.func @transform_1(%arg0: i32) -> (i32, i32) {
    %c0_i32 = arith.constant 0 : i32
    %c0_i32_0 = arith.constant 0 : i32
    return %arg0, %c0_i32 : i32, i32
  }
}

</mosaic_0001>

<llo_original>
// kernel: tpu_custom_call.1
$region0: #{tpu_custom_call.1}
  #allocation0 [shape = 'u32[]', space=smem, size = 0x4, offset = 0x4, fixed_abs, tag = 'smem constant byte address 0x4 - core index']
  #allocation1 [shape = 'u32[144,128]{1,0:T(1,128)}', space=vmem, size = 0x12000, scoped, tag = 'internal scratch']
  %s0 = inlined_call_operand.hbm [shape: f32[8,256], index: 0, kind: input, shape index: {}]
  %s1 = inlined_call_operand.vmem [shape: f32[8,1], index: 1, kind: output, shape index: {}]
  %s2 = sld [smem:[#allocation0]]
  $region18: #{tpu_custom_call.1} parent=0
    _
  %s4 = ssub.s32 1, %s2
  %s5 = scalar_select 0, %s4, %s2
  $region1: #{tpu_custom_call.1} parent=0
    #allocation2 [shape = 'u8[8192]{0}', space=vmem, size = 0x2000, scoped, tag = 'input window, operand 0, single buffered']
    #allocation3 [shape = 's32[1]{0}', space=sflag, size = 0x4, scoped, tag = 'scoped memory for tpu_custom_call.1']
    %6 = vsyncpa [#allocation3], 0
    // Predicated region
    $region2: #{tpu_custom_call.1} parent=1 // pred_check
      _
    $region3: #{tpu_custom_call.1} parent=1 // pred_check_branch
      %8 = sbr.rel (0) target = $region5
    $region4: #{tpu_custom_call.1} parent=1 // pred_region
      %s10 = ssub.s32 256, 256
      %11 = vsyncadd [#allocation3], %s10
      %s13 = sshll.u32 [#allocation2], 4
      %s14 = int_to_ptr.vmem [resolvable:$true] %s13
      %16 = dma.hbm_to_vmem [thread:$0]  %s0, 256, %s14, [#allocation3]
    $region5: #{tpu_custom_call.1} parent=1 // pred_fallthru
      _
    // Predicated region
    $region6: #{tpu_custom_call.1} parent=1 // pred_check
      _
    $region7: #{tpu_custom_call.1} parent=1 // pred_check_branch
      %18 = sbr.rel (0) target = $region9
    $region8: #{tpu_custom_call.1} parent=1 // pred_region
      %19 = dma.done [#allocation3], 256
    $region9: #{tpu_custom_call.1} parent=1 // pred_fallthru
      _
    %v20 = vld [vmem:[#allocation2] sm:$0xff]
    %v21 = vld [vmem:[#allocation2 + $0x8] sm:$0xff]
    %v22 = vadd.f32 %v20, %v21
    %23 = vadd.xlane.f32.xlu0 %v22
    %v24 = vpop.xlane.xlu0 %23
    %v25 = vmul.f32 %v24, 0.00390625
    %vm26 = vcmask 7168
    %27 = vst.msk [vmem:[%s1] sm:$0xff] %vm26, %v25
    // Predicated region
    $region10: #{tpu_custom_call.1} parent=1 // pred_check
      _
    $region11: #{tpu_custom_call.1} parent=1 // pred_check_branch
      %29 = sbr.rel (0) target = $region13
    $region12: #{tpu_custom_call.1} parent=1 // pred_region
      _
    $region13: #{tpu_custom_call.1} parent=1 // pred_fallthru
      _
    // Predicated region
    $region14: #{tpu_custom_call.1} parent=1 // pred_check
      _
    $region15: #{tpu_custom_call.1} parent=1 // pred_check_branch
      %31 = sbr.rel (0) target = $region17
    $region16: #{tpu_custom_call.1} parent=1 // pred_region
      _
    $region17: #{tpu_custom_call.1} parent=1 // pred_fallthru
      _
    %32 = vsyncpa [#allocation3], 1

</llo_original>
